<compile_context>
chip_gen: v7x
topology: tpu7x:2x2x1
jax: 0.10.0
libtpu: 0.0.40
codegen_flags: <defaults>
</compile_context>

<pallas_src>
import jax
import jax.numpy as jnp
from jax.experimental import pallas as pl
from jax.experimental.pallas import tpu as pltpu

_TARGET_BLOCK_BYTES = 4 << 20      # ~4 MiB per block (safe on v5e/v6e/v7x VMEM)

# tanh-based erf approximation constants (same family as the GELU-tanh approx):
#   erf(z) ~= tanh(A*z + B*z^3)
_ERF_A = 1.1283791670955126        # 2 / sqrt(pi)
_ERF_B = 0.10091094924887556       # 0.044715 * 4 / sqrt(pi)


def _smu_kernel_exact(mu_ref, x_ref, o_ref):
    # mu_ref: SMEM (1,) f32 scalar.  x_ref/o_ref: VMEM (tile_rows, C) tiles.
    mu = mu_ref[0]
    x = x_ref[...].astype(jnp.float32)                 # compute in f32
    y = x * (1.0 + jax.lax.erf(mu * x)) * 0.5          # exact erf (torch parity)
    o_ref[...] = y.astype(o_ref.dtype)


def _smu_kernel_approx(mu_ref, x_ref, o_ref):
    # EUP-friendly variant: tanh runs on the EUP slot, leaving only a handful
    # of VALU ops per element -> removes the VALU ceiling on v6e/v7x.
    mu = mu_ref[0]
    x = x_ref[...].astype(jnp.float32)
    z = mu * x
    t = jnp.tanh(z * (_ERF_A + _ERF_B * (z * z)))      # ~erf(z)
    o_ref[...] = (x * (1.0 + t) * 0.5).astype(o_ref.dtype)


def _sublane_multiple(dtype):
    itemsize = jnp.dtype(dtype).itemsize
    return {4: 8, 2: 16, 1: 32}.get(itemsize, 8)


def _choose_lane_width(n, last_dim):
    """Pick C that divides n exactly (so no pad / no tail slice is ever needed)."""
    # Fast path: widest multiple of 128 (<= 4096) that divides n -> lane-dense.
    for k in range(32, 0, -1):
        c = 128 * k
        if n % c == 0:
            return c
    # No multiple-of-128 divisor: keep the natural memory layout by collapsing
    # leading dims.  Block lane dim == full array dim -> legal tiling; stores
    # are narrower but HBM traffic stays at exactly 1 read + 1 write.
    # TODO(synk): a huge 1-D input with prime-ish length lands here as a single
    # (1, n) block; fine for this module's feature-sized tensors.
    return max(1, last_dim)


def smu_forward(x, mu, *, approx=False):
    """Elementwise SMU: x * (1 + erf(mu * x)) / 2."""
    orig_shape = x.shape
    dtype = x.dtype
    n = x.size
    if n == 0:
        return x
    itemsize = jnp.dtype(dtype).itemsize
    sub = _sublane_multiple(dtype)

    last_dim = orig_shape[-1] if x.ndim >= 1 else 1
    C = _choose_lane_width(n, last_dim)
    rows = n // C
    x2d = x.reshape(rows, C)                   # exact reshape: no pad, no slice

    # ~4 MiB blocks; tile_rows a multiple of the sublane granularity, or the
    # whole (possibly small / non-aligned) first dim when it fits one block.
    row_bytes = C * itemsize
    target_rows = max(sub, (_TARGET_BLOCK_BYTES // row_bytes) // sub * sub)
    tile_rows = rows if rows <= target_rows else target_rows

    # v7x megacore balance: for small odd grids on non-trivial inputs, prefer
    # an even block count so both TensorCores get equal work.
    num_blocks = pl.cdiv(rows, tile_rows)
    if (num_blocks % 2 == 1 and num_blocks <= 7
            and n * itemsize >= (1 << 20) and rows >= 2 * sub):
        cand = -(-rows // (num_blocks + 1))           # ceil rows / (blocks+1)
        cand = max(sub, -(-cand // sub) * sub)        # round up to sublane mult
        if pl.cdiv(rows, cand) % 2 == 0:
            tile_rows = cand

    grid = (pl.cdiv(rows, tile_rows),)         # ragged last row-block handled by Pallas
    mu_arr = jnp.asarray(mu, dtype=jnp.float32).reshape((1,))
    kernel = _smu_kernel_approx if approx else _smu_kernel_exact

    out2d = pl.pallas_call(
        kernel,
        out_shape=jax.ShapeDtypeStruct((rows, C), dtype),
        grid_spec=pltpu.PrefetchScalarGridSpec(
            num_scalar_prefetch=0,
            grid=grid,
            in_specs=[
                pl.BlockSpec(memory_space=pltpu.SMEM),           # mu scalar
                pl.BlockSpec((tile_rows, C), lambda i: (i, 0)),  # x tile
            ],
            out_specs=pl.BlockSpec((tile_rows, C), lambda i: (i, 0)),
        ),
        compiler_params=pltpu.CompilerParams(
            dimension_semantics=("parallel",),   # shards blocks across TCs on v7x
            vmem_limit_bytes=32 * 1024 * 1024,
        ),
        cost_estimate=pl.CostEstimate(
            flops=25 * n, transcendentals=n, bytes_accessed=2 * n * itemsize),
    )(mu_arr, x2d)

    return out2d.reshape(orig_shape)


def smu_reference(x, mu):
    xf = x.astype(jnp.float32)
    return (xf * (1.0 + jax.lax.erf(jnp.float32(mu) * xf)) / 2.0).astype(x.dtype)


if __name__ == "__main__":
    key = jax.random.PRNGKey(0)
    mu = jnp.float32(0.5)                      # nn.Parameter(torch.Tensor([0.5]))

    # NCHW-like activation input (lane-dense path: 2048 elems -> C=2048).
    x = jax.random.normal(key, (2, 4, 16, 16), dtype=jnp.float32)
    out = jax.block_until_ready(smu_forward(x, mu))
    ref = smu_reference(x, mu)
    assert out.shape == x.shape and out.dtype == x.dtype
    assert jnp.allclose(out, ref, atol=1e-6, rtol=1e-6)

    # Non-128-divisible element count -> pad-free fallback layout (15, 7).
    x2 = jax.random.normal(jax.random.PRNGKey(1), (3, 5, 7), dtype=jnp.float32)
    out2 = jax.block_until_ready(smu_forward(x2, mu))
    assert jnp.allclose(out2, smu_reference(x2, mu), atol=1e-6, rtol=1e-6)

    # bf16 I/O (compute stays f32 inside the kernel).
    x3 = jax.random.normal(jax.random.PRNGKey(2), (2, 8, 256), dtype=jnp.bfloat16)
    out3 = jax.block_until_ready(smu_forward(x3, mu))
    assert out3.shape == x3.shape and out3.dtype == jnp.bfloat16
    assert jnp.allclose(out3.astype(jnp.float32),
                        smu_reference(x3, mu).astype(jnp.float32),
                        atol=2e-2, rtol=2e-2)

    # EUP-based tanh-erf approximation (v6e/v7x VALU relief); looser tolerance,
    # deliberately not bit-matching torch.erf.
    out4 = jax.block_until_ready(smu_forward(x, mu, approx=True))
    assert jnp.allclose(out4, ref, atol=2e-2, rtol=2e-2)

    print("KERNEL_OK")
</pallas_src>

<mosaic_0001>
module attributes {stable_mosaic.version = 11 : i64} {
  func.func @_smu_kernel_exact(%arg0: i32, %arg1: memref<1xf32, #tpu.memory_space<smem>>, %arg2: memref<1x2048xf32, #tpu.memory_space<vmem>>, %arg3: memref<1x2048xf32, #tpu.memory_space<vmem>>) attributes {dimension_semantics = [#tpu.dimension_semantics<parallel>], iteration_bounds = array<i64: 1>, scalar_prefetch = 0 : i64, scratch_operands = 0 : i64, tpu.core_type = #tpu.core_type<tc>, window_params = [{transform_indices = @transform_0, window_bounds = array<i64: 1>}, {transform_indices = @transform_1, window_bounds = array<i64: 1, 2048>}, {transform_indices = @transform_2, window_bounds = array<i64: 1, 2048>}]} {
    %c0 = arith.constant 0 : index
    %0 = memref.load %arg1[%c0] : memref<1xf32, #tpu.memory_space<smem>>
    %c0_0 = arith.constant 0 : index
    %c0_1 = arith.constant 0 : index
    %1 = vector.load %arg2[%c0_0, %c0_1] : memref<1x2048xf32, #tpu.memory_space<vmem>>, vector<1x2048xf32>
    %2 = vector.broadcast %0 : f32 to vector<1x2048xf32>
    %3 = arith.mulf %2, %1 : vector<1x2048xf32>
    %4 = math.erf %3 : vector<1x2048xf32>
    %cst = arith.constant 1.000000e+00 : f32
    %5 = vector.broadcast %cst : f32 to vector<1x2048xf32>
    %6 = arith.addf %5, %4 : vector<1x2048xf32>
    %7 = arith.mulf %1, %6 : vector<1x2048xf32>
    %cst_2 = arith.constant 5.000000e-01 : f32
    %8 = vector.broadcast %cst_2 : f32 to vector<1x2048xf32>
    %9 = arith.mulf %7, %8 : vector<1x2048xf32>
    %c0_3 = arith.constant 0 : index
    %c0_4 = arith.constant 0 : index
    %10 = vector.load %arg3[%c0_3, %c0_4] : memref<1x2048xf32, #tpu.memory_space<vmem>>, vector<1x2048xf32>
    tpu.vector_store %arg3[%c0_3, %c0_4], %9 {strides = array<i32>} : memref<1x2048xf32, #tpu.memory_space<vmem>>, vector<1x2048xf32>,
    return
  }
  func.func @transform_0(%arg0: i32) -> i32 {
    %c0_i32 = arith.constant 0 : i32
    %c0_i32_0 = arith.constant 0 : i32
    return %c0_i32 : i32
  }
  func.func @transform_1(%arg0: i32) -> (i32, i32) {
    %c0_i32 = arith.constant 0 : i32
    %c0_i32_0 = arith.constant 0 : i32
    return %arg0, %c0_i32 : i32, i32
  }
  func.func @transform_2(%arg0: i32) -> (i32, i32) {
    %c0_i32 = arith.constant 0 : i32
    %c0_i32_0 = arith.constant 0 : i32
    return %arg0, %c0_i32 : i32, i32
  }
}

</mosaic_0001>

<llo_original>
// kernel: tpu_custom_call.1
$region0: #{tpu_custom_call.1}
  #allocation0 [shape = 'u32[]', space=smem, size = 0x4, offset = 0x4, fixed_abs, tag = 'smem constant byte address 0x4 - core index']
  #allocation1 [shape = 'u32[144,128]{1,0:T(1,128)}', space=vmem, size = 0x12000, scoped, tag = 'internal scratch']
  #allocation2 [shape = 'f32[1]{0:T(128)S(6)}', space=smem, size = 0x200, scoped, tag = 'scoped memory for tpu_custom_call.1']
  %s0 = inlined_call_operand.<no memory space> [shape: f32[1], index: 0, kind: input, shape index: {}]
  %s1 = inlined_call_operand.hbm [shape: f32[1,2048], index: 1, kind: input, shape index: {}]
  %s2 = inlined_call_operand.hbm [shape: f32[1,2048], index: 2, kind: output, shape index: {}]
  %s3 = sld [smem:[#allocation0]]
  $region22: #{tpu_custom_call.1} parent=0
    _
  %s5 = ssub.s32 1, %s3
  %s6 = scalar_select 0, %s5, %s3
  %7 = sst [smem:[#allocation2]] %s0
  $region1: #{tpu_custom_call.1} parent=0
    #allocation3 [shape = 'u8[8192]{0}', space=vmem, size = 0x2000, scoped, tag = 'input window, operand 1, single buffered']
    #allocation4 [shape = 's32[1]{0}', space=sflag, size = 0x4, scoped, tag = 'scoped memory for tpu_custom_call.1']
    #allocation5 [shape = 's32[1]{0}', space=sflag, size = 0x4, scoped, tag = 'scoped memory for tpu_custom_call.1']
    #allocation6 [shape = 'u8[8192]{0}', space=vmem, size = 0x2000, scoped, tag = 'output window, operand 0, single buffered']
    %8 = vsyncpa [#allocation4], 0
    %9 = vsyncpa [#allocation5], 0
    // Predicated region
    $region2: #{tpu_custom_call.1} parent=1 // pred_check
      _
    $region3: #{tpu_custom_call.1} parent=1 // pred_check_branch
      %11 = sbr.rel (0) target = $region5
    $region4: #{tpu_custom_call.1} parent=1 // pred_region
      _
    $region5: #{tpu_custom_call.1} parent=1 // pred_fallthru
      _
    // Predicated region
    $region6: #{tpu_custom_call.1} parent=1 // pred_check
      _
    $region7: #{tpu_custom_call.1} parent=1 // pred_check_branch
      %13 = sbr.rel (0) target = $region9
    $region8: #{tpu_custom_call.1} parent=1 // pred_region
      %s15 = ssub.s32 256, 256
      %16 = vsyncadd [#allocation4], %s15
      %s18 = sshll.u32 [#allocation3], 4
      %s19 = int_to_ptr.vmem [resolvable:$true] %s18
      %21 = dma.hbm_to_vmem [thread:$0]  %s1, 256, %s19, [#allocation4]
    $region9: #{tpu_custom_call.1} parent=1 // pred_fallthru
      _
    // Predicated region
    $region10: #{tpu_custom_call.1} parent=1 // pred_check
      _
    $region11: #{tpu_custom_call.1} parent=1 // pred_check_branch
      %23 = sbr.rel (0) target = $region13
    $region12: #{tpu_custom_call.1} parent=1 // pred_region
      %24 = dma.done [#allocation4], 256
    $region13: #{tpu_custom_call.1} parent=1 // pred_fallthru
      _
    %s25 = sld [smem:[#allocation2]]
    %v26 = vld [vmem:[#allocation3] sm:$0xff]
    %v27 = vld [vmem:[#allocation3 + $0x8] sm:$0xff]
    %v28 = vstv %s25
    %v29 = vmul.f32 %v28, %v26
    %v30 = vmul.f32 %v28, %v27
    %v31 = verf.f32.pop %v29
    %v32 = verf.f32.pop %v30
    %v33 = vadd.f32 %v31, 1.0
    %v34 = vadd.f32 %v32, 1.0
    %v35 = vmul.f32 %v26, %v33
    %v36 = vmul.f32 %v27, %v34
    %v37 = vmul.f32 %v35, 0.5
    %v38 = vmul.f32 %v36, 0.5
    %39 = vst [vmem:[#allocation6] sm:$0xff] %v37
    %40 = vst [vmem:[#allocation6 + $0x8] sm:$0xff] %v38
    // Predicated region
    $region14: #{tpu_custom_call.1} parent=1 // pred_check
      _
    $region15: #{tpu_custom_call.1} parent=1 // pred_check_branch
      %42 = sbr.rel (0) target = $region17
    $region16: #{tpu_custom_call.1} parent=1 // pred_region
      %s44 = ssub.s32 256, 256
      %45 = vsyncadd [#allocation5], %s44
      %s47 = sshll.u32 [#allocation6], 4
      %s48 = int_to_ptr.vmem [resolvable:$true] %s47
      %50 = dma.vmem_to_hbm [thread:$0]  %s48, 256, %s2, [#allocation5]
    $region17: #{tpu_custom_call.1} parent=1 // pred_fallthru
      _
    // Predicated region
    $region18: #{tpu_custom_call.1} parent=1 // pred_check
      _
    $region19: #{tpu_custom_call.1} parent=1 // pred_check_branch
      %52 = sbr.rel (0) target = $region21
    $region20: #{tpu_custom_call.1} parent=1 // pred_region
      %53 = dma.done [#allocation5], 256
    $region21: #{tpu_custom_call.1} parent=1 // pred_fallthru
      _
    %54 = vsyncpa [#allocation4], 1
    %55 = vsyncpa [#allocation5], 1

</llo_original>
